<compile_context>
chip_gen: v7x
topology: tpu7x:2x2x1
jax: 0.10.0
libtpu: 0.0.40
codegen_flags: <defaults>
</compile_context>

<pallas_src>
import jax
import jax.numpy as jnp
from jax.experimental import pallas as pl
from jax.experimental.pallas import tpu as pltpu


_F = 20                       # feature dim of weight1 (20x20)
_ROW_BYTES_F32 = 2 * _F * 4   # one x row in + one y row out, f32


def _matmul_kernel(x_ref, w1_ref, o_ref):
    # Hot path: single MXU matmul of the VMEM-resident tiles, f32 accumulate,
    # stored straight to the f32 output (no cast on the result path).
    o_ref[...] = jnp.dot(
        x_ref[...], w1_ref[...], preferred_element_type=jnp.float32
    )


def _chip_config():
    """Generation-aware VMEM budget (for the grid-free path) and batch tile."""
    kind = ""
    try:
        kind = jax.devices()[0].device_kind.lower()
    except Exception:
        pass
    if "v7" in kind:
        # 64 MiB VMEM per TC, ~3.2 TB/s HBM -> ~1.1 MB/step break-even.
        return {"vmem_budget": 48 << 20, "batch_tile": 16384}
    if ("v5" in kind) or ("v6" in kind):
        # 128 MiB VMEM, ~0.45 MB/step break-even on v6e.
        return {"vmem_budget": 96 << 20, "batch_tile": 16384}
    # Unknown chip: stay inside the default 32 MiB scoped-VMEM limit.
    return {"vmem_budget": 24 << 20, "batch_tile": 16384}


def _cost_estimate(batch):
    # flops = 2*B*20*20 matmul; bytes = x in + w in + y out; no transcendentals.
    return pl.CostEstimate(
        flops=2 * batch * _F * _F,
        transcendentals=0,
        bytes_accessed=batch * _F * 4 + _F * _F * 4 + batch * _F * 4,
    )


def _forward_small(x, weight1, vmem_budget):
    """Whole-array, grid-free launch: single DMA in, single MXU op, single DMA
    out.  Used for everything that fits the VMEM budget (launch-overhead
    dominated regime — no pipeline machinery, no double buffering)."""
    B, _ = x.shape
    F_out = weight1.shape[1]
    return pl.pallas_call(
        _matmul_kernel,
        out_shape=jax.ShapeDtypeStruct((B, F_out), jnp.float32),
        in_specs=[
            pl.BlockSpec(memory_space=pltpu.MemorySpace.VMEM),
            pl.BlockSpec(memory_space=pltpu.MemorySpace.VMEM),
        ],
        out_specs=pl.BlockSpec(memory_space=pltpu.MemorySpace.VMEM),
        cost_estimate=_cost_estimate(B),
        compiler_params=pltpu.CompilerParams(vmem_limit_bytes=vmem_budget),
    )(x, weight1)


def _forward_batched(x, weight1, tb):
    """Batch-tiled launch for very large B: big tiles (~1.3 MB of x per step)
    amortize the ~0.35 µs/step overhead, weight1 stays resident across the
    grid, and the batch axis is megacore-parallel (2 TCs on v7x)."""
    B, F_in = x.shape
    F_out = weight1.shape[1]
    # Defensive: keep the tile a multiple of 8 sublanes and guarantee >=2 grid
    # steps so the "parallel" axis can actually shard across v7x's two cores.
    tb = max(8, min(tb, 8 * max(1, (B // 2) // 8)))
    return pl.pallas_call(
        _matmul_kernel,
        out_shape=jax.ShapeDtypeStruct((B, F_out), jnp.float32),
        grid=(pl.cdiv(B, tb),),
        in_specs=[
            pl.BlockSpec((tb, F_in), lambda i: (i, 0)),
            pl.BlockSpec((F_in, F_out), lambda i: (0, 0)),
        ],
        out_specs=pl.BlockSpec((tb, F_out), lambda i: (i, 0)),
        cost_estimate=_cost_estimate(B),
        compiler_params=pltpu.CompilerParams(
            dimension_semantics=("parallel",),
        ),
    )(x, weight1)


def my_model_forward(x, weight1):
    """Pallas equivalent of MyModel's (implied) forward: x @ weight1."""
    cfg = _chip_config()
    B = x.shape[0]
    # Grid-free whole-array path whenever x + out (plus a little headroom for
    # weight1) fit the scoped-VMEM budget; batched path only for huge B.
    max_rows_gridfree = (cfg["vmem_budget"] - (1 << 20)) // _ROW_BYTES_F32
    if B <= max_rows_gridfree:
        return _forward_small(x, weight1, cfg["vmem_budget"])
    return _forward_batched(x, weight1, cfg["batch_tile"])


def init_params(key):
    """Deterministic stand-in for torch.rand(20, 20) initializers."""
    k1, k2 = jax.random.split(key)
    weight1 = jax.random.uniform(k1, (20, 20), dtype=jnp.float32)  # nn.Parameter
    weight2 = jax.random.uniform(k2, (20, 20), dtype=jnp.float32)  # plain tensor, unused
    return weight1, weight2


if __name__ == "__main__":
    key = jax.random.PRNGKey(0)
    k_params, k_x, k_xbig = jax.random.split(key, 3)

    weight1, weight2 = init_params(k_params)

    # Small batch (matches the module's 20-feature weights): grid-free path.
    B = 8
    x = jax.random.uniform(k_x, (B, 20), dtype=jnp.float32)
    y = jax.block_until_ready(my_model_forward(x, weight1))
    y_ref = x @ weight1
    assert y.shape == (B, 20)
    assert jnp.allclose(y, y_ref, atol=1e-5, rtol=1e-5)

    # Exercise the batched (grid + parallel batch axis) path directly with a
    # small tile so it compiles/runs quickly; in production it only fires for
    # VMEM-budget-exceeding batch sizes.
    B_big = 2048
    x_big = jax.random.uniform(k_xbig, (B_big, 20), dtype=jnp.float32)
    y_big = jax.block_until_ready(_forward_batched(x_big, weight1, tb=1024))
    y_big_ref = x_big @ weight1
    assert y_big.shape == (B_big, 20)
    assert jnp.allclose(y_big, y_big_ref, atol=1e-4, rtol=1e-5)

    print("KERNEL_OK")
</pallas_src>

<mosaic_0001>
module attributes {stable_mosaic.version = 11 : i64} {
  func.func @_matmul_kernel(%arg0: memref<8x20xf32, #tpu.memory_space<vmem>>, %arg1: memref<20x20xf32, #tpu.memory_space<vmem>>, %arg2: memref<8x20xf32, #tpu.memory_space<vmem>>) attributes {dimension_semantics = [], scalar_prefetch = 0 : i64, scratch_operands = 0 : i64, tpu.core_type = #tpu.core_type<tc>} {
    %c0 = arith.constant 0 : index
    %c0_0 = arith.constant 0 : index
    %0 = vector.load %arg0[%c0, %c0_0] : memref<8x20xf32, #tpu.memory_space<vmem>>, vector<8x20xf32>
    %c0_1 = arith.constant 0 : index
    %c0_2 = arith.constant 0 : index
    %1 = vector.load %arg1[%c0_1, %c0_2] : memref<20x20xf32, #tpu.memory_space<vmem>>, vector<20x20xf32>
    %cst = arith.constant dense<0.000000e+00> : vector<8x20xf32>
    %2 = tpu.matmul %0, %1, %cst {dimension_numbers = #tpu.dot_dimension_numbers<[1], [0], [0], [1], [0, 0, 1, 1], [], []>} : vector<8x20xf32>, vector<20x20xf32>, vector<8x20xf32> -> vector<8x20xf32>
    %c0_3 = arith.constant 0 : index
    %c0_4 = arith.constant 0 : index
    %3 = vector.load %arg2[%c0_3, %c0_4] : memref<8x20xf32, #tpu.memory_space<vmem>>, vector<8x20xf32>
    tpu.vector_store %arg2[%c0_3, %c0_4], %2 {strides = array<i32>} : memref<8x20xf32, #tpu.memory_space<vmem>>, vector<8x20xf32>,
    return
  }
}

</mosaic_0001>

<llo_original>
// kernel: tpu_custom_call.1
$region0: #{tpu_custom_call.1}
  #allocation0 [shape = 'u32[]', space=smem, size = 0x4, offset = 0x4, fixed_abs, tag = 'smem constant byte address 0x4 - core index']
  #allocation1 [shape = 'u32[144,128]{1,0:T(1,128)}', space=vmem, size = 0x12000, scoped, tag = 'internal scratch']
  %s0 = inlined_call_operand.hbm [shape: f32[8,20], index: 0, kind: input, shape index: {}]
  %s1 = inlined_call_operand.hbm [shape: f32[20,20], index: 1, kind: input, shape index: {}]
  %s2 = inlined_call_operand.hbm [shape: f32[8,20], index: 2, kind: output, shape index: {}]
  %s3 = sld [smem:[#allocation0]]
  $region26: #{tpu_custom_call.1} parent=0
    _
  %s5 = ssub.s32 1, %s3
  %s6 = scalar_select 0, %s5, %s3
  $region1: #{tpu_custom_call.1} parent=0
    #allocation2 [shape = 'u8[4096]{0}', space=vmem, size = 0x1000, scoped, tag = 'input window, operand 0, single buffered']
    #allocation3 [shape = 's32[1]{0}', space=sflag, size = 0x4, scoped, tag = 'scoped memory for tpu_custom_call.1']
    #allocation4 [shape = 's32[1]{0}', space=sflag, size = 0x4, scoped, tag = 'scoped memory for tpu_custom_call.1']
    #allocation5 [shape = 'u8[12288]{0}', space=vmem, size = 0x3000, scoped, tag = 'input window, operand 1, single buffered']
    #allocation6 [shape = 's32[1]{0}', space=sflag, size = 0x4, scoped, tag = 'scoped memory for tpu_custom_call.1']
    #allocation7 [shape = 'u8[4096]{0}', space=vmem, size = 0x1000, scoped, tag = 'output window, operand 0, single buffered']
    %7 = vsyncpa [#allocation3], 0
    %8 = vsyncpa [#allocation6], 0
    %9 = vsyncpa [#allocation4], 0
    // Predicated region
    $region2: #{tpu_custom_call.1} parent=1 // pred_check
      _
    $region3: #{tpu_custom_call.1} parent=1 // pred_check_branch
      %11 = sbr.rel (0) target = $region5
    $region4: #{tpu_custom_call.1} parent=1 // pred_region
      %s13 = ssub.s32 128, 128
      %14 = vsyncadd [#allocation3], %s13
      %s16 = sshll.u32 [#allocation2], 4
      %s17 = int_to_ptr.vmem [resolvable:$true] %s16
      %19 = dma.hbm_to_vmem [thread:$0]  %s0, 128, %s17, [#allocation3]
    $region5: #{tpu_custom_call.1} parent=1 // pred_fallthru
      _
    // Predicated region
    $region6: #{tpu_custom_call.1} parent=1 // pred_check
      _
    $region7: #{tpu_custom_call.1} parent=1 // pred_check_branch
      %21 = sbr.rel (0) target = $region9
    $region8: #{tpu_custom_call.1} parent=1 // pred_region
      %s23 = ssub.s32 384, 384
      %24 = vsyncadd [#allocation6], %s23
      %s25 = sshll.u32 [#allocation5], 4
      %s26 = int_to_ptr.vmem [resolvable:$true] %s25
      %31 = dma.hbm_to_vmem [thread:$0]  %s1, 384, %s26, [#allocation6], 128, 128, 8
    $region9: #{tpu_custom_call.1} parent=1 // pred_fallthru
      _
    // Predicated region
    $region10: #{tpu_custom_call.1} parent=1 // pred_check
      _
    $region11: #{tpu_custom_call.1} parent=1 // pred_check_branch
      %33 = sbr.rel (0) target = $region13
    $region12: #{tpu_custom_call.1} parent=1 // pred_region
      %34 = dma.done [#allocation3], 128
    $region13: #{tpu_custom_call.1} parent=1 // pred_fallthru
      _
    // Predicated region
    $region14: #{tpu_custom_call.1} parent=1 // pred_check
      _
    $region15: #{tpu_custom_call.1} parent=1 // pred_check_branch
      %36 = sbr.rel (0) target = $region17
    $region16: #{tpu_custom_call.1} parent=1 // pred_region
      %37 = dma.done [#allocation6], 384
    $region17: #{tpu_custom_call.1} parent=1 // pred_fallthru
      _
    %v38 = vld [vmem:[#allocation2] sm:$0xff]
    %v39 = vld [vmem:[#allocation5] sm:$0xff]
    %v40 = vld [vmem:[#allocation5 + $0x8] sm:$0xff]
    %v41 = vld [vmem:[#allocation5 + $0x10] sm:$0xf]
    %vm42 = vcmask 162816
    %v44 = vsel %vm42, %v38, 0
    %vm46 = vcmask 1043456
    %v48 = vsel %vm46, %v41, 0
    %50 = vmatprep.subr.mxu0 0.0
    %51 = vmatpush1.msra.mxu0 %v39
    %52 = vmatprep.subr.mxu0 0.0
    %53 = vmatpush1.msra.mxu0 %v40
    %54 = vmatprep.subr.mxu0 0.0
    %55 = vmatpush1.msra.mxu0 %v48
    %56 = vmatprep.subr.mxu0 0.0
    %57 = vmatpush1.msra.mxu0 0.0
    %58 = vmatprep.subr.mxu0 0.0
    %59 = vmatpush1.msra.mxu0 0.0
    %60 = vmatprep.subr.mxu0 0.0
    %61 = vmatpush1.msra.mxu0 0.0
    %62 = vmatprep.subr.mxu0 0.0
    %63 = vmatpush1.msra.mxu0 0.0
    %64 = vmatprep.subr.mxu0 0.0
    %65 = vmatpush1.msra.mxu0 0.0
    %66 = vmatprep.subr.mxu0 0.0
    %67 = vmatpush1.msra.mxu0 0.0
    %68 = vmatprep.subr.mxu0 0.0
    %69 = vmatpush1.msra.mxu0 0.0
    %70 = vmatprep.subr.mxu0 0.0
    %71 = vmatpush1.msra.mxu0 0.0
    %72 = vmatprep.subr.mxu0 0.0
    %73 = vmatpush1.msra.mxu0 0.0
    %74 = vmatprep.subr.mxu0 0.0
    %75 = vmatpush1.msra.mxu0 0.0
    %76 = vmatprep.subr.mxu0 0.0
    %77 = vmatpush1.msra.mxu0 0.0
    %78 = vmatprep.subr.mxu0 0.0
    %79 = vmatpush1.msra.mxu0 0.0
    %80 = vmatprep.subr.mxu0 0.0
    %81 = vmatpush1.msra.mxu0 0.0
    %82 = vmatprep.subr.mxu0 0.0
    %83 = vmatpush1.msra.mxu0 0.0
    %84 = vmatprep.subr.mxu0 0.0
    %85 = vmatpush1.msra.mxu0 0.0
    %86 = vmatprep.subr.mxu0 0.0
    %87 = vmatpush1.msra.mxu0 0.0
    %88 = vmatprep.subr.mxu0 0.0
    %89 = vmatpush1.msra.mxu0 0.0
    %90 = vmatprep.subr.mxu0 0.0
    %91 = vmatpush1.msra.mxu0 0.0
    %92 = vmatprep.subr.mxu0 0.0
    %93 = vmatpush1.msra.mxu0 0.0
    %94 = vmatprep.subr.mxu0 0.0
    %95 = vmatpush1.msra.mxu0 0.0
    %96 = vmatprep.subr.mxu0 0.0
    %97 = vmatpush1.msra.mxu0 0.0
    %98 = vmatprep.subr.mxu0 0.0
    %99 = vmatpush1.msra.mxu0 0.0
    %100 = vmatprep.subr.mxu0 0.0
    %101 = vmatpush1.msra.mxu0 0.0
    %102 = vmatprep.subr.mxu0 0.0
    %103 = vmatpush1.msra.mxu0 0.0
    %104 = vmatprep.subr.mxu0 0.0
    %105 = vmatpush1.msra.mxu0 0.0
    %106 = vmatprep.subr.mxu0 0.0
    %107 = vmatpush1.msra.mxu0 0.0
    %108 = vmatprep.subr.mxu0 0.0
    %109 = vmatpush1.msra.mxu0 0.0
    %110 = vmatprep.subr.mxu0 0.0
    %111 = vmatpush1.msra.mxu0 0.0
    %112 = vmatprep.subr.mxu0 0.0
    %113 = vmatpush1.msra.mxu0 0.0
    %114 = vmatprep.mubr.f32.mxu0 0.0
    %115 = vmatmul.mubr.f32.gmra.mrb[0].mxu0 %v44
    %v116 = vpop.f32.mrb[0].mxu0
    %v117 = vadd.f32 0.0, %v116
    %v118 = vpop.f32.mrb[0].mxu0
    %119 = vdwg.mxu0
    %120 = vst.msk [vmem:[#allocation7] sm:$0xff] %vm42, %v117
    // Predicated region
    $region18: #{tpu_custom_call.1} parent=1 // pred_check
      _
    $region19: #{tpu_custom_call.1} parent=1 // pred_check_branch
      %122 = sbr.rel (0) target = $region21
    $region20: #{tpu_custom_call.1} parent=1 // pred_region
      %s124 = ssub.s32 128, 128
      %125 = vsyncadd [#allocation4], %s124
      %s127 = sshll.u32 [#allocation7], 4
      %s128 = int_to_ptr.vmem [resolvable:$true] %s127
      %130 = dma.vmem_to_hbm [thread:$0]  %s128, 128, %s2, [#allocation4]
    $region21: #{tpu_custom_call.1} parent=1 // pred_fallthru
      _
    // Predicated region
    $region22: #{tpu_custom_call.1} parent=1 // pred_check
      _
    $region23: #{tpu_custom_call.1} parent=1 // pred_check_branch
      %132 = sbr.rel (0) target = $region25
    $region24: #{tpu_custom_call.1} parent=1 // pred_region
      %133 = dma.done [#allocation4], 128
    $region25: #{tpu_custom_call.1} parent=1 // pred_fallthru
      _
    %134 = vsyncpa [#allocation3], 1
    %135 = vsyncpa [#allocation6], 1
    %136 = vsyncpa [#allocation4], 1

</llo_original>
